<compile_context>
chip_gen: v7x
topology: tpu7x:2x2x1
jax: 0.10.0
libtpu: 0.0.40
codegen_flags: <defaults>
</compile_context>

<pallas_src>
import math

import numpy as np
import jax
import jax.numpy as jnp
from jax.experimental import pallas as pl
from jax.experimental.pallas import tpu as pltpu


def _round_up(v, m):
    return ((v + m - 1) // m) * m


# ---------------------------------------------------------------------------
# Kernel: one (row-tile, out-tile) block of  y = x @ Wt + b, K-accumulated
# ---------------------------------------------------------------------------
def _linear_kernel(x_ref, wt_ref, b_ref, o_ref, acc_ref):
    k = pl.program_id(2)

    @pl.when(k == 0)
    def _():
        acc_ref[...] = jnp.zeros_like(acc_ref)

    acc_ref[...] += jnp.dot(x_ref[...], wt_ref[...],
                            preferred_element_type=jnp.float32)

    @pl.when(k == pl.num_programs(2) - 1)
    def _():
        o_ref[...] = (acc_ref[...] + b_ref[...]).astype(o_ref.dtype)


def _pick_tiles(n, din, dout, row_tile):
    # M (row) tile: multiple of 8, capped at what is needed; ensure >= 2 row
    # tiles when possible so v7x megacore has two tiles to shard.
    tm = max(8, _round_up(min(row_tile, n), 8))
    if n >= 16 and pl.cdiv(n, tm) < 2:
        tm = max(8, _round_up(pl.cdiv(n, 2), 8))

    # N (out-feature) tile: lane-dense 512/256/128 when they divide evenly,
    # else fall back to the full dim (masked stores, only for small widths).
    if dout % 512 == 0:
        tn = 512
    elif dout % 256 == 0:
        tn = 256
    elif dout % 128 == 0:
        tn = 128
    else:
        tn = dout

    # K (in-feature) tile: only tile when it divides evenly (ragged K would
    # corrupt the accumulation); keeps x / weight tiles VMEM-portable.
    tk = 512 if (din >= 1024 and din % 512 == 0) else din
    return tm, tn, tk


# ---------------------------------------------------------------------------
# Wrapper: weight already pre-transposed (Din, Dout) at init; no per-call
#          transpose / pad / slice.
# ---------------------------------------------------------------------------
def linear_forward(x, wt, b=None, *, row_tile=512, compute_dtype=None):
    """Fused y = x @ wt + b.

    x  : (..., in_dim)
    wt : (in_dim, out_dim)    weight, pre-transposed once at init
    b  : (out_dim,) | (1, out_dim) | None
    compute_dtype: e.g. jnp.bfloat16 for the MXU low-precision path
                   (accumulation stays f32). None -> use x.dtype.
    """
    *lead, din = x.shape
    dout = wt.shape[1]
    out_dtype = x.dtype

    x2 = x.reshape(-1, din)
    n = x2.shape[0]

    if compute_dtype is not None:
        x2 = x2.astype(compute_dtype)
        wt = wt.astype(compute_dtype)          # no-op if stored in bf16 at init

    if b is None:
        b2 = jnp.zeros((1, dout), jnp.float32)
    else:
        b2 = b.reshape(1, dout).astype(jnp.float32)

    tm, tn, tk = _pick_tiles(n, din, dout, row_tile)
    grid = (pl.cdiv(n, tm), dout // tn, din // tk)

    cost = pl.CostEstimate(
        flops=2 * n * din * dout,
        transcendentals=0,
        bytes_accessed=(x2.size * x2.dtype.itemsize
                        + wt.size * wt.dtype.itemsize
                        + b2.size * 4
                        + n * dout * jnp.dtype(out_dtype).itemsize),
    )

    y = pl.pallas_call(
        _linear_kernel,
        out_shape=jax.ShapeDtypeStruct((n, dout), out_dtype),
        grid=grid,
        in_specs=[
            pl.BlockSpec((tm, tk), lambda i, j, k: (i, k)),    # x row/K tile
            pl.BlockSpec((tk, tn), lambda i, j, k: (k, j)),    # weight K/N tile
            pl.BlockSpec((1, tn), lambda i, j, k: (0, j)),     # bias N tile
        ],
        out_specs=pl.BlockSpec((tm, tn), lambda i, j, k: (i, j)),
        scratch_shapes=[pltpu.VMEM((tm, tn), jnp.float32)],
        compiler_params=pltpu.CompilerParams(
            dimension_semantics=("parallel", "parallel", "arbitrary"),
            vmem_limit_bytes=48 * 1024 * 1024),
        cost_estimate=cost,
    )(x2, wt, b2)

    return y.reshape(*lead, dout)


# ---------------------------------------------------------------------------
# Parameter init matching the PyTorch module (weight stored pre-transposed)
# ---------------------------------------------------------------------------
_GAINS = {"linear": 1.0, "relu": math.sqrt(2.0), "tanh": 5.0 / 3.0, "sigmoid": 1.0}


def init_linear_params(key, in_dim, out_dim, *, bias=True, w_init="linear",
                       dtype=jnp.float32):
    """xavier_uniform_ weight (PyTorch semantics), stored as (Din, Dout)."""
    gain = _GAINS[w_init]
    kw, kb = jax.random.split(key)
    bound_w = gain * math.sqrt(6.0 / (in_dim + out_dim))
    wt = jax.random.uniform(kw, (in_dim, out_dim), jnp.float32,
                            -bound_w, bound_w).astype(dtype)
    if not bias:
        return wt, None
    bound_b = 1.0 / math.sqrt(in_dim)                    # nn.Linear default
    b = jax.random.uniform(kb, (out_dim,), jnp.float32, -bound_b, bound_b)
    return wt, b


def params_from_torch_layout(w, b=None, *, dtype=jnp.float32):
    """One-time conversion from PyTorch (out_dim, in_dim) layout."""
    return jnp.asarray(w).T.astype(dtype), (None if b is None else jnp.asarray(b))


# ---------------------------------------------------------------------------
if __name__ == "__main__":
    key = jax.random.PRNGKey(0)
    k1, k2, k3, k4, k5, k6 = jax.random.split(key, 6)

    # 1) Small case mirroring in-model usage: (B, T, in_dim) -> (B, T, out_dim)
    B, T, din, dout = 2, 8, 32, 48
    wt, b = init_linear_params(k1, din, dout, w_init="linear")
    x = jax.random.normal(k2, (B, T, din), jnp.float32)
    y = jax.block_until_ready(linear_forward(x, wt, b))
    y_ref = x @ wt + b
    np.testing.assert_allclose(np.asarray(y), np.asarray(y_ref),
                               atol=2e-4, rtol=2e-4)

    # 2) Ragged row count + Dout-tiled path (no padding, no output slice)
    n2, din2, dout2 = 1000, 256, 1024
    wt2, b2 = init_linear_params(k3, din2, dout2, w_init="relu")
    x2 = jax.random.normal(k4, (n2, din2), jnp.float32)
    y2 = jax.block_until_ready(linear_forward(x2, wt2, b2))
    y2_ref = x2 @ wt2 + b2
    np.testing.assert_allclose(np.asarray(y2), np.asarray(y2_ref),
                               atol=1e-3, rtol=1e-3)

    # 3) K-tiled accumulator path (Din >= 1024) with bf16-in / f32-accumulate
    n3, din3, dout3 = 128, 1024, 256
    wt3, b3 = init_linear_params(k5, din3, dout3, w_init="linear",
                                 dtype=jnp.bfloat16)
    x3 = jax.random.normal(k6, (n3, din3), jnp.float32)
    y3 = jax.block_until_ready(
        linear_forward(x3, wt3, b3, compute_dtype=jnp.bfloat16))
    y3_ref = (x3.astype(jnp.bfloat16).astype(jnp.float32)
              @ wt3.astype(jnp.float32)) + b3
    np.testing.assert_allclose(np.asarray(y3), np.asarray(y3_ref),
                               atol=1e-2, rtol=1e-2)

    print("KERNEL_OK")
</pallas_src>

<mosaic_0001>
module attributes {stable_mosaic.version = 11 : i64} {
  func.func @_linear_kernel(%arg0: i32, %arg1: i32, %arg2: i32, %arg3: memref<8x32xf32, #tpu.memory_space<vmem>>, %arg4: memref<32x48xf32, #tpu.memory_space<vmem>>, %arg5: memref<1x48xf32, #tpu.memory_space<vmem>>, %arg6: memref<8x48xf32, #tpu.memory_space<vmem>>, %arg7: memref<8x48xf32, #tpu.memory_space<vmem>>) attributes {dimension_semantics = [#tpu.dimension_semantics<parallel>, #tpu.dimension_semantics<parallel>, #tpu.dimension_semantics<arbitrary>], iteration_bounds = array<i64: 2, 1, 1>, scalar_prefetch = 0 : i64, scratch_operands = 1 : i64, tpu.core_type = #tpu.core_type<tc>, window_params = [{transform_indices = @transform_0, window_bounds = array<i64: 8, 32>}, {transform_indices = @transform_1, window_bounds = array<i64: 32, 48>}, {transform_indices = @transform_2, window_bounds = array<i64: 1, 48>}, {transform_indices = @transform_3, window_bounds = array<i64: 8, 48>}]} {
    %c0_i32 = arith.constant 0 : i32
    %0 = arith.cmpi eq, %arg2, %c0_i32 : i32
    %1 = arith.extui %0 : i1 to i32
    %c0_i32_0 = arith.constant 0 : i32
    %2 = arith.cmpi ne, %1, %c0_i32_0 : i32
    scf.if %2 {
      %cst_10 = arith.constant 0.000000e+00 : f32
      %12 = vector.broadcast %cst_10 : f32 to vector<8x48xf32>
      %c0_11 = arith.constant 0 : index
      %c0_12 = arith.constant 0 : index
      %13 = vector.load %arg7[%c0_11, %c0_12] : memref<8x48xf32, #tpu.memory_space<vmem>>, vector<8x48xf32>
      tpu.vector_store %arg7[%c0_11, %c0_12], %12 {strides = array<i32>} : memref<8x48xf32, #tpu.memory_space<vmem>>, vector<8x48xf32>,
    } else {
    }
    %c0 = arith.constant 0 : index
    %c0_1 = arith.constant 0 : index
    %3 = vector.load %arg7[%c0, %c0_1] : memref<8x48xf32, #tpu.memory_space<vmem>>, vector<8x48xf32>
    %c0_2 = arith.constant 0 : index
    %c0_3 = arith.constant 0 : index
    %4 = vector.load %arg3[%c0_2, %c0_3] : memref<8x32xf32, #tpu.memory_space<vmem>>, vector<8x32xf32>
    %c0_4 = arith.constant 0 : index
    %c0_5 = arith.constant 0 : index
    %5 = vector.load %arg4[%c0_4, %c0_5] : memref<32x48xf32, #tpu.memory_space<vmem>>, vector<32x48xf32>
    %cst = arith.constant dense<0.000000e+00> : vector<8x48xf32>
    %6 = tpu.matmul %4, %5, %cst {dimension_numbers = #tpu.dot_dimension_numbers<[1], [0], [0], [1], [0, 0, 1, 1], [], []>} : vector<8x32xf32>, vector<32x48xf32>, vector<8x48xf32> -> vector<8x48xf32>
    %7 = arith.addf %3, %6 : vector<8x48xf32>
    %c0_6 = arith.constant 0 : index
    %c0_7 = arith.constant 0 : index
    %8 = vector.load %arg7[%c0_6, %c0_7] : memref<8x48xf32, #tpu.memory_space<vmem>>, vector<8x48xf32>
    tpu.vector_store %arg7[%c0_6, %c0_7], %7 {strides = array<i32>} : memref<8x48xf32, #tpu.memory_space<vmem>>, vector<8x48xf32>,
    %c0_i32_8 = arith.constant 0 : i32
    %9 = arith.cmpi eq, %arg2, %c0_i32_8 : i32
    %10 = arith.extui %9 : i1 to i32
    %c0_i32_9 = arith.constant 0 : i32
    %11 = arith.cmpi ne, %10, %c0_i32_9 : i32
    scf.if %11 {
      %c0_10 = arith.constant 0 : index
      %c0_11 = arith.constant 0 : index
      %12 = vector.load %arg7[%c0_10, %c0_11] : memref<8x48xf32, #tpu.memory_space<vmem>>, vector<8x48xf32>
      %c0_12 = arith.constant 0 : index
      %c0_13 = arith.constant 0 : index
      %13 = vector.load %arg5[%c0_12, %c0_13] : memref<1x48xf32, #tpu.memory_space<vmem>>, vector<1x48xf32>
      %14 = vector.broadcast %13 : vector<1x48xf32> to vector<8x48xf32>
      %15 = arith.addf %12, %14 : vector<8x48xf32>
      %c0_14 = arith.constant 0 : index
      %c0_15 = arith.constant 0 : index
      %16 = vector.load %arg6[%c0_14, %c0_15] : memref<8x48xf32, #tpu.memory_space<vmem>>, vector<8x48xf32>
      tpu.vector_store %arg6[%c0_14, %c0_15], %15 {strides = array<i32>} : memref<8x48xf32, #tpu.memory_space<vmem>>, vector<8x48xf32>,
    } else {
    }
    return
  }
  func.func @transform_0(%arg0: i32, %arg1: i32, %arg2: i32) -> (i32, i32) {
    %c0_i32 = arith.constant 0 : i32
    return %arg0, %arg2 : i32, i32
  }
  func.func @transform_1(%arg0: i32, %arg1: i32, %arg2: i32) -> (i32, i32) {
    %c0_i32 = arith.constant 0 : i32
    return %arg2, %arg1 : i32, i32
  }
  func.func @transform_2(%arg0: i32, %arg1: i32, %arg2: i32) -> (i32, i32) {
    %c0_i32 = arith.constant 0 : i32
    %c0_i32_0 = arith.constant 0 : i32
    return %c0_i32, %arg1 : i32, i32
  }
  func.func @transform_3(%arg0: i32, %arg1: i32, %arg2: i32) -> (i32, i32) {
    %c0_i32 = arith.constant 0 : i32
    return %arg0, %arg1 : i32, i32
  }
}

</mosaic_0001>

<llo_original>
// kernel: tpu_custom_call.1
$region0: #{tpu_custom_call.1}
  #allocation0 [shape = 'u32[]', space=smem, size = 0x4, offset = 0x4, fixed_abs, tag = 'smem constant byte address 0x4 - core index']
  #allocation1 [shape = 'u32[144,128]{1,0:T(1,128)}', space=vmem, size = 0x12000, scoped, tag = 'internal scratch']
  #allocation2 [shape = 'f32[8,48]{1,0:T(8,128)}', space=vmem, size = 0x1000, scoped, tag = 'scratch operand']
  %s0 = inlined_call_operand.hbm [shape: f32[16,32], index: 0, kind: input, shape index: {}]
  %s1 = inlined_call_operand.hbm [shape: f32[32,48], index: 1, kind: input, shape index: {}]
  %s2 = inlined_call_operand.vmem [shape: f32[1,48], index: 2, kind: input, shape index: {}]
  %s3 = inlined_call_operand.hbm [shape: f32[16,48], index: 3, kind: output, shape index: {}]
  %s4 = sld [smem:[#allocation0]]
  $region61: #{tpu_custom_call.1} parent=0
    _
  %s6 = ssub.s32 1, %s4
  %s7 = scalar_select 0, %s6, %s4
  $region1: #{tpu_custom_call.1} parent=0
    #allocation3 [shape = 'u8[8192]{0}', space=vmem, size = 0x2000, scoped, tag = 'input window, operand 0']
    #allocation4 [shape = 's32[2]{0}', space=sflag, size = 0x8, scoped, tag = 'scoped memory for tpu_custom_call.1']
    #allocation5 [shape = 's32[2]{0}', space=sflag, size = 0x8, scoped, tag = 'scoped memory for tpu_custom_call.1']
    #allocation6 [shape = 'u8[16384]{0}', space=vmem, size = 0x4000, scoped, tag = 'input window, operand 1, single buffered']
    #allocation7 [shape = 's32[1]{0}', space=sflag, size = 0x4, scoped, tag = 'scoped memory for tpu_custom_call.1']
    #allocation8 [shape = 'u8[8192]{0}', space=vmem, size = 0x2000, scoped, tag = 'output window, operand 0']
    %8 = vsyncpa [#allocation4], 0
    %s9 = scalar_lea.sflag [#allocation4], 1
    %10 = vsyncpa %s9, 0
    %11 = vsyncpa [#allocation7], 0
    %12 = vsyncpa [#allocation5], 0
    %s13 = scalar_lea.sflag [#allocation5], 1
    %14 = vsyncpa %s13, 0
    loop: start=0, step=1, limit=4
    $region2: #{tpu_custom_call.1} parent=1 // loop_pre_header
      _
    $region3: #{tpu_custom_call.1} parent=1 // loop_header
      %s16 = sphi 0, %s20
      %p17 = scmp.ge.s32.totalorder %s16, 4
      %s23 = sphi 0, %s42
      %s24 = sphi 0, %s38
      %s25 = sphi 0, %s34
      %s26 = sphi 0, %s23
      %s27 = sphi 0, %s24
      %s28 = sphi 0, %s25
      %s29 = sphi 0, %s26
      %s30 = sphi 0, %s27
      %s31 = sphi 0, %s28
      %s47 = sphi 0, %s49
      %s50 = sphi 0, %s47
      %s51 = sphi 0, %s50
      %s67 = sphi 0, %s51
      %s75 = sphi 0, %s77
      %s78 = sphi 0, %s75
      %s79 = sphi 0, %s78
      %s95 = sphi 0, %s79
      %s101 = sphi 0, %s103
      %s104 = sphi 0, %s101
      %s105 = sphi 0, %s104
      %s121 = sphi 0, %s105
      %s129 = sphi 0, %s131
      %s132 = sphi 0, %s129
      %s133 = sphi 0, %s132
      %s149 = sphi 0, %s133
    $region4: #{tpu_custom_call.1} parent=1 // loop_header_branch
      %19 = sbr.rel (%p17) target = $region8
    $region5: #{tpu_custom_call.1} parent=1 // loop_body
      %s21 = ssub.s32 %s16, 1
      %s22 = ssub.s32 %s16, 2
      %s32 = sadd.s32 1, %s25
      %p33 = scmp.ge.s32.totalorder %s32, 1
      %s34 = scalar_select %p33, 0, %s32
      %s35 = sadd.s32 1, %s24
      %s36 = scalar_select %p33, %s35, %s24
      %p37 = scmp.ge.s32.totalorder %s36, 1
      %s38 = scalar_select %p37, 0, %s36
      %s39 = sadd.s32 1, %s23
      %s40 = scalar_select %p37, %s39, %s23
      %p41 = scmp.ge.s32.totalorder %s40, 2
      %s42 = scalar_select %p41, 0, %s40
      %s43 = ssub.s32 %s23, %s42
      %s44 = ssub.s32 %s25, %s34
      %s45 = sor.u32 %s43, %s44
      %p46 = scmp.eq.s32.totalorder %s45, 0
      %s48 = sadd.s32 %s47, 1
      %s49 = scalar_select %p46, %s47, %s48
      %p52 = pneg %p46
      %p53 = scmp.eq.s32.totalorder %s16, 1
      %p54 = por %p52, %p53
      %p55 = scmp.ne.s32.totalorder %s47, %s50
      %p56 = scmp.eq.s32.totalorder %s16, 0
      %p57 = por %p55, %p56
      %p58 = scmp.ne.s32.totalorder %s47, %s50
      %p59 = scmp.eq.s32.totalorder %s21, 1
      %p60 = por %p58, %p59
      %p61 = scmp.ne.s32.totalorder %s50, %s51
      %p62 = scmp.eq.s32.totalorder %s21, 0
      %p63 = por %p61, %p62
      %p64 = scmp.ne.s32.totalorder %s50, %s51
      %p65 = scmp.eq.s32.totalorder %s22, 1
      %p66 = por %p64, %p65
      %p68 = scmp.ne.s32.totalorder %s51, %s67
      %p69 = scmp.eq.s32.totalorder %s22, 0
      %p70 = por %p68, %p69
      %s71 = ssub.s32 %s25, %s34
      %s72 = ssub.s32 %s24, %s38
      %s73 = sor.u32 %s71, %s72
      %p74 = scmp.eq.s32.totalorder %s73, 0
      %s76 = sadd.s32 %s75, 1
      %s77 = scalar_select %p74, %s75, %s76
      %p80 = pneg %p74
      %p81 = scmp.eq.s32.totalorder %s16, 1
      %p82 = por %p80, %p81
      %p83 = scmp.ne.s32.totalorder %s75, %s78
      %p84 = scmp.eq.s32.totalorder %s16, 0
      %p85 = por %p83, %p84
      %p86 = scmp.ne.s32.totalorder %s75, %s78
      %p87 = scmp.eq.s32.totalorder %s21, 1
      %p88 = por %p86, %p87
      %p89 = scmp.ne.s32.totalorder %s78, %s79
      %p90 = scmp.eq.s32.totalorder %s21, 0
      %p91 = por %p89, %p90
      %p92 = scmp.ne.s32.totalorder %s78, %s79
      %p93 = scmp.eq.s32.totalorder %s22, 1
      %p94 = por %p92, %p93
      %p96 = scmp.ne.s32.totalorder %s79, %s95
      %p97 = scmp.eq.s32.totalorder %s22, 0
      %p98 = por %p96, %p97
      %s99 = ssub.s32 %s24, %s38
      %p100 = scmp.eq.s32.totalorder %s99, 0
      %s102 = sadd.s32 %s101, 1
      %s103 = scalar_select %p100, %s101, %s102
      %p106 = pneg %p100
      %p107 = scmp.eq.s32.totalorder %s16, 1
      %p108 = por %p106, %p107
      %p109 = scmp.ne.s32.totalorder %s101, %s104
      %p110 = scmp.eq.s32.totalorder %s16, 0
      %p111 = por %p109, %p110
      %p112 = scmp.ne.s32.totalorder %s101, %s104
      %p113 = scmp.eq.s32.totalorder %s21, 1
      %p114 = por %p112, %p113
      %p115 = scmp.ne.s32.totalorder %s104, %s105
      %p116 = scmp.eq.s32.totalorder %s21, 0
      %p117 = por %p115, %p116
      %p118 = scmp.ne.s32.totalorder %s104, %s105
      %p119 = scmp.eq.s32.totalorder %s22, 1
      %p120 = por %p118, %p119
      %p122 = scmp.ne.s32.totalorder %s105, %s121
      %p123 = scmp.eq.s32.totalorder %s22, 0
      %p124 = por %p122, %p123
      %s125 = ssub.s32 %s23, %s42
      %s126 = ssub.s32 %s24, %s38
      %s127 = sor.u32 %s125, %s126
      %p128 = scmp.eq.s32.totalorder %s127, 0
      %s130 = sadd.s32 %s129, 1
      %s131 = scalar_select %p128, %s129, %s130
      %p134 = pneg %p128
      %p135 = scmp.eq.s32.totalorder %s16, 1
      %p136 = por %p134, %p135
      %p137 = scmp.ne.s32.totalorder %s129, %s132
      %p138 = scmp.eq.s32.totalorder %s16, 0
      %p139 = por %p137, %p138
      %p140 = scmp.ne.s32.totalorder %s129, %s132
      %p141 = scmp.eq.s32.totalorder %s21, 1
      %p142 = por %p140, %p141
      %p143 = scmp.ne.s32.totalorder %s132, %s133
      %p144 = scmp.eq.s32.totalorder %s21, 0
      %p145 = por %p143, %p144
      %p146 = scmp.ne.s32.totalorder %s132, %s133
      %p147 = scmp.eq.s32.totalorder %s22, 1
      %p148 = por %p146, %p147
      %p150 = scmp.ne.s32.totalorder %s133, %s149
      %p151 = scmp.eq.s32.totalorder %s22, 0
      %p152 = por %p150, %p151
      %p153 = scmp.le.s32.totalorder 1, %s16
      %p154 = scmp.lt.s32.totalorder %s16, 3
      %p155 = pnand %p153, %p154
      %p156 = pneg %p155
      // Predicated region
      $region9: #{tpu_custom_call.1} parent=5 // pred_check
        _
      $region10: #{tpu_custom_call.1} parent=5 // pred_check_branch
        %158 = sbr.rel (%p155) target = $region12
      $region11: #{tpu_custom_call.1} parent=5 // pred_region
        %s159 = ssub.s32 %s16, 1
        // Predicated region
        $region13: #{tpu_custom_call.1} parent=11 // pred_check
          %p160 = pneg %p91
        $region14: #{tpu_custom_call.1} parent=11 // pred_check_branch
          %162 = sbr.rel (%p160) target = $region16
        $region15: #{tpu_custom_call.1} parent=11 // pred_region
          %s163 = smul.u32 4, %s28
          %s165 = ssub.s32 512, 512
          %166 = vsyncadd [#allocation7], %s165
          %s167 = sadd.s32 %s27, %s163
          %s168 = smul.addr %s167, 128
          %s169 = scalar_lea.hbm %s1, %s168
          %s170 = sshll.u32 [#allocation6], 4
          %s171 = int_to_ptr.vmem [resolvable:$true] %s170
          %176 = dma.hbm_to_vmem [thread:$0]  %s169, 512, %s171, [#allocation7], 128, 128, 8
        $region16: #{tpu_custom_call.1} parent=11 // pred_fallthru
          _
        // Predicated region
        $region17: #{tpu_custom_call.1} parent=11 // pred_check
          %p177 = pneg %p117
        $region18: #{tpu_custom_call.1} parent=11 // pred_check_branch
          %179 = sbr.rel (%p177) target = $region20
        $region19: #{tpu_custom_call.1} parent=11 // pred_region
          %p180 = scmp.lt.s32.totalorder %s27, 0
          %s181 = scalar_select %p180, %s27, 0
          %s182 = scalar_lea.vmem %s2, %s181
        $region20: #{tpu_custom_call.1} parent=11 // pred_fallthru
          _
      $region12: #{tpu_custom_call.1} parent=5 // pred_fallthru
        _
      %p183 = scmp.lt.s32.totalorder %s16, 2
      // Predicated region
      $region21: #{tpu_custom_call.1} parent=5 // pred_check
        %p184 = pneg %p183
      $region22: #{tpu_custom_call.1} parent=5 // pred_check_branch
        %186 = sbr.rel (%p184) target = $region24
      $region23: #{tpu_custom_call.1} parent=5 // pred_region
        // Predicated region
        $region25: #{tpu_custom_call.1} parent=23 // pred_check
          %p187 = pneg %p57
        $region26: #{tpu_custom_call.1} parent=23 // pred_check_branch
          %189 = sbr.rel (%p187) target = $region28
        $region27: #{tpu_custom_call.1} parent=23 // pred_region
          %s190 = sand.u32 %s47, 1
          %s191 = scalar_lea.sflag [#allocation4], %s190
          %s192 = sand.u32 %s47, 1
          %s193 = smul.addr %s192, 8
          %s194 = scalar_lea.vmem [#allocation3], %s193
          %s196 = ssub.s32 128, 128
          %197 = vsyncadd %s191, %s196
          %s198 = sadd.s32 %s25, %s23
          %s199 = smul.addr %s198, 128
          %s200 = scalar_lea.hbm %s0, %s199
          %s202 = sshll.u32 %s194, 4
          %s203 = int_to_ptr.vmem [resolvable:$true] %s202
          %205 = dma.hbm_to_vmem [thread:$0]  %s200, 128, %s203, %s191
        $region28: #{tpu_custom_call.1} parent=23 // pred_fallthru
          _
      $region24: #{tpu_custom_call.1} parent=5 // pred_fallthru
        _
      %p206 = scmp.le.s32.totalorder 1, %s16
      %p207 = scmp.lt.s32.totalorder %s16, 3
      %p208 = pnand %p206, %p207
      %p209 = pneg %p208
      // Predicated region
      $region29: #{tpu_custom_call.1} parent=5 // pred_check
        _
      $region30: #{tpu_custom_call.1} parent=5 // pred_check_branch
        %211 = sbr.rel (%p208) target = $region32
      $region31: #{tpu_custom_call.1} parent=5 // pred_region
        %s212 = ssub.s32 %s16, 1
        %s213 = sand.u32 %s50, 1
        %s214 = scalar_lea.sflag [#allocation4], %s213
        %s215 = sand.u32 %s50, 1
        %s216 = smul.addr %s215, 8
        %s217 = scalar_lea.vmem [#allocation3], %s216
        // Predicated region
        $region33: #{tpu_custom_call.1} parent=31 // pred_check
          %p218 = pneg %p63
        $region34: #{tpu_custom_call.1} parent=31 // pred_check_branch
          %220 = sbr.rel (%p218) target = $region36
        $region35: #{tpu_custom_call.1} parent=31 // pred_region
          %221 = dma.done %s214, 128
        $region36: #{tpu_custom_call.1} parent=31 // pred_fallthru
          _
        // Predicated region
        $region37: #{tpu_custom_call.1} parent=31 // pred_check
          %p222 = pneg %p91
        $region38: #{tpu_custom_call.1} parent=31 // pred_check_branch
          %224 = sbr.rel (%p222) target = $region40
        $region39: #{tpu_custom_call.1} parent=31 // pred_region
          %225 = dma.done [#allocation7], 512
        $region40: #{tpu_custom_call.1} parent=31 // pred_fallthru
          _
        %s226 = sand.u32 %s50, 1
        %s227 = scalar_lea.sflag [#allocation4], %s226
        %s228 = sand.u32 %s50, 1
        %s229 = smul.addr %s228, 8
        %s230 = scalar_lea.vmem [#allocation3], %s229
        %p231 = pneg %p63
        %p232 = pneg %p60
        %p233 = pneg %p91
        %p234 = pneg %p88
        %p235 = scmp.lt.s32.totalorder %s27, 0
        %s236 = scalar_select %p235, %s27, 0
        %s237 = scalar_lea.vmem %s2, %s236
        %p238 = pneg %p117
        %p239 = pneg %p114
        %p240 = pneg %p145
        %p241 = pneg %p142
        %s242 = sand.u32 %s132, 1
        %s243 = scalar_lea.sflag [#allocation5], %s242
        %s244 = sand.u32 %s132, 1
        %s245 = smul.addr %s244, 8
        %s246 = scalar_lea.vmem [#allocation8], %s245
        %s247 = smul.u32 4, %s28
        %p248 = scmp.lt.s32.totalorder %s27, 0
        %s249 = scalar_select %p248, %s27, 0
        %s250 = scalar_lea.vmem %s2, %s249
        %p251 = scmp.eq.s32.totalorder %s28, 0
        // Predicated region
        $region41: #{tpu_custom_call.1} parent=31 // pred_check
          %p252 = pneg %p251
        $region42: #{tpu_custom_call.1} parent=31 // pred_check_branch
          %254 = sbr.rel (%p252) target = $region44
        $region43: #{tpu_custom_call.1} parent=31 // pred_region
          %vm255 = vcmask 392192
          %256 = vst.msk [vmem:[#allocation2] sm:$0xff] %vm255, 0.0
        $region44: #{tpu_custom_call.1} parent=31 // pred_fallthru
          _
        %v257 = vld [vmem:[#allocation2] sm:$0xff]
        %v258 = vld [vmem:[%s217] sm:$0xff]
        %v259 = vld [vmem:[#allocation6] sm:$0xff]
        %v260 = vld [vmem:[#allocation6 + $0x8] sm:$0xff]
        %v261 = vld [vmem:[#allocation6 + $0x10] sm:$0xff]
        %v262 = vld [vmem:[#allocation6 + $0x18] sm:$0xff]
        %vm263 = vcmask 261120
        %v265 = vsel %vm263, %v258, 0
        %267 = vmatprep.subr.mxu0 0.0
        %268 = vmatpush1.msra.mxu0 %v259
        %269 = vmatprep.subr.mxu0 0.0
        %270 = vmatpush1.msra.mxu0 %v260
        %271 = vmatprep.subr.mxu0 0.0
        %272 = vmatpush1.msra.mxu0 %v261
        %273 = vmatprep.subr.mxu0 0.0
        %274 = vmatpush1.msra.mxu0 %v262
        %275 = vmatprep.subr.mxu0 0.0
        %276 = vmatpush1.msra.mxu0 0.0
        %277 = vmatprep.subr.mxu0 0.0
        %278 = vmatpush1.msra.mxu0 0.0
        %279 = vmatprep.subr.mxu0 0.0
        %280 = vmatpush1.msra.mxu0 0.0
        %281 = vmatprep.subr.mxu0 0.0
        %282 = vmatpush1.msra.mxu0 0.0
        %283 = vmatprep.subr.mxu0 0.0
        %284 = vmatpush1.msra.mxu0 0.0
        %285 = vmatprep.subr.mxu0 0.0
        %286 = vmatpush1.msra.mxu0 0.0
        %287 = vmatprep.subr.mxu0 0.0
        %288 = vmatpush1.msra.mxu0 0.0
        %289 = vmatprep.subr.mxu0 0.0
        %290 = vmatpush1.msra.mxu0 0.0
        %291 = vmatprep.subr.mxu0 0.0
        %292 = vmatpush1.msra.mxu0 0.0
        %293 = vmatprep.subr.mxu0 0.0
        %294 = vmatpush1.msra.mxu0 0.0
        %295 = vmatprep.subr.mxu0 0.0
        %296 = vmatpush1.msra.mxu0 0.0
        %297 = vmatprep.subr.mxu0 0.0
        %298 = vmatpush1.msra.mxu0 0.0
        %299 = vmatprep.subr.mxu0 0.0
        %300 = vmatpush1.msra.mxu0 0.0
        %301 = vmatprep.subr.mxu0 0.0
        %302 = vmatpush1.msra.mxu0 0.0
        %303 = vmatprep.subr.mxu0 0.0
        %304 = vmatpush1.msra.mxu0 0.0
        %305 = vmatprep.subr.mxu0 0.0
        %306 = vmatpush1.msra.mxu0 0.0
        %307 = vmatprep.subr.mxu0 0.0
        %308 = vmatpush1.msra.mxu0 0.0
        %309 = vmatprep.subr.mxu0 0.0
        %310 = vmatpush1.msra.mxu0 0.0
        %311 = vmatprep.subr.mxu0 0.0
        %312 = vmatpush1.msra.mxu0 0.0
        %313 = vmatprep.subr.mxu0 0.0
        %314 = vmatpush1.msra.mxu0 0.0
        %315 = vmatprep.subr.mxu0 0.0
        %316 = vmatpush1.msra.mxu0 0.0
        %317 = vmatprep.subr.mxu0 0.0
        %318 = vmatpush1.msra.mxu0 0.0
        %319 = vmatprep.subr.mxu0 0.0
        %320 = vmatpush1.msra.mxu0 0.0
        %321 = vmatprep.subr.mxu0 0.0
        %322 = vmatpush1.msra.mxu0 0.0
        %323 = vmatprep.subr.mxu0 0.0
        %324 = vmatpush1.msra.mxu0 0.0
        %325 = vmatprep.subr.mxu0 0.0
        %326 = vmatpush1.msra.mxu0 0.0
        %327 = vmatprep.subr.mxu0 0.0
        %328 = vmatpush1.msra.mxu0 0.0
        %329 = vmatprep.subr.mxu0 0.0
        %330 = vmatpush1.msra.mxu0 0.0
        %331 = vmatprep.mubr.f32.mxu0 0.0
        %332 = vmatmul.mubr.f32.gmra.mrb[0].mxu0 %v265
        %v333 = vpop.f32.mrb[0].mxu0
        %v334 = vadd.f32 0.0, %v333
        %v335 = vpop.f32.mrb[0].mxu0
        %336 = vdwg.mxu0
        %v337 = vadd.f32 %v257, %v334
        %vm338 = vcmask 392192
        %339 = vst.msk [vmem:[#allocation2] sm:$0xff] %vm338, %v337
        // Predicated region
        $region45: #{tpu_custom_call.1} parent=31 // pred_check
          %p340 = pneg %p251
        $region46: #{tpu_custom_call.1} parent=31 // pred_check_branch
          %342 = sbr.rel (%p340) target = $region48
        $region47: #{tpu_custom_call.1} parent=31 // pred_region
          %v343 = vld [vmem:[#allocation2] sm:$0xff]
          %v344 = vld [vmem:[%s250] sm:$0x1]
          %v346 = vlaneseq
          %v347 = vshrl.u32 %v346, 7
          %v348 = vsub.s32 0, %v347
          %v349 = vrot.slane %v344, %v348
          %v351 = vadd.f32 %v343, %v349
          %352 = vst.msk [vmem:[%s246] sm:$0xff] %vm338, %v351
        $region48: #{tpu_custom_call.1} parent=31 // pred_fallthru
          _
        %s353 = sand.u32 %s132, 1
        %s354 = scalar_lea.sflag [#allocation5], %s353
        %s355 = sand.u32 %s132, 1
        %s356 = smul.addr %s355, 8
        %s357 = scalar_lea.vmem [#allocation8], %s356
        // Predicated region
        $region49: #{tpu_custom_call.1} parent=31 // pred_check
          %p358 = pneg %p142
        $region50: #{tpu_custom_call.1} parent=31 // pred_check_branch
          %360 = sbr.rel (%p358) target = $region52
        $region51: #{tpu_custom_call.1} parent=31 // pred_region
          %s362 = ssub.s32 128, 128
          %363 = vsyncadd %s354, %s362
          %s364 = sadd.s32 %s27, %s26
          %s365 = smul.addr %s364, 128
          %s366 = scalar_lea.hbm %s3, %s365
          %s368 = sshll.u32 %s357, 4
          %s369 = int_to_ptr.vmem [resolvable:$true] %s368
          %371 = dma.vmem_to_hbm [thread:$0]  %s369, 128, %s366, %s354
        $region52: #{tpu_custom_call.1} parent=31 // pred_fallthru
          _
      $region32: #{tpu_custom_call.1} parent=5 // pred_fallthru
        _
      %p372 = scmp.le.s32.totalorder 2, %s16
      // Predicated region
      $region53: #{tpu_custom_call.1} parent=5 // pred_check
        %p373 = pneg %p372
      $region54: #{tpu_custom_call.1} parent=5 // pred_check_branch
        %375 = sbr.rel (%p373) target = $region56
      $region55: #{tpu_custom_call.1} parent=5 // pred_region
        %s376 = ssub.s32 %s16, 2
        // Predicated region
        $region57: #{tpu_custom_call.1} parent=55 // pred_check
          %p377 = pneg %p148
        $region58: #{tpu_custom_call.1} parent=55 // pred_check_branch
          %379 = sbr.rel (%p377) target = $region60
        $region59: #{tpu_custom_call.1} parent=55 // pred_region
          %s380 = sand.u32 %s133, 1
          %s381 = scalar_lea.sflag [#allocation5], %s380
          %s382 = sand.u32 %s133, 1
          %s383 = smul.addr %s382, 8
          %s384 = scalar_lea.vmem [#allocation8], %s383
          %385 = dma.done %s381, 128
        $region60: #{tpu_custom_call.1} parent=55 // pred_fallthru
          _
      $region56: #{tpu_custom_call.1} parent=5 // pred_fallthru
        _
    $region6: #{tpu_custom_call.1} parent=1 // loop_footer
      %s20 = sadd.s32 1, %s16
    $region7: #{tpu_custom_call.1} parent=1 // loop_footer_branch
      %15 = sbr.rel target = $region3
    $region8: #{tpu_custom_call.1} parent=1 // loop_exit
      _
    %386 = vsyncpa [#allocation4], 1
    %s387 = scalar_lea.sflag [#allocation4], 1
    %388 = vsyncpa %s387, 1
    %389 = vsyncpa [#allocation7], 1
    %390 = vsyncpa [#allocation5], 1
    %s391 = scalar_lea.sflag [#allocation5], 1
    %392 = vsyncpa %s391, 1

</llo_original>
